<compile_context>
chip_gen: v7x
topology: tpu7x:2x2x1
jax: 0.10.0
libtpu: 0.0.40
codegen_flags: <defaults>
</compile_context>

<pallas_src>
import math

import jax
import jax.numpy as jnp
import numpy as np
from jax.experimental import pallas as pl
from jax.experimental.pallas import tpu as pltpu


# ---------------------------------------------------------------------------
# VMEM-aware sizing helpers (padding-aware)
# ---------------------------------------------------------------------------

def _vmem_capacity_bytes():
    """Reported VMEM capacity (may be per-core or per-chip depending on gen)."""
    try:
        info = pltpu.get_tpu_info()
        cap = getattr(info, "vmem_capacity_bytes", None)
        if cap:
            return int(cap)
    except Exception:
        pass
    return 64 * 1024 * 1024  # conservative fallback = v7x per-core VMEM


def _vmem_limit_bytes():
    # Lift Mosaic's 16/32 MiB scoped-VMEM default, but clamp to 48 MiB:
    # get_tpu_info() may report per-chip capacity on dual-TC v7x whose
    # per-core VMEM is only 64 MiB.
    # TODO(synk): raise toward ~96 MiB when the chip is a confirmed
    # single-TC v5e/v6e (128 MiB per core).
    return min(int(_vmem_capacity_bytes() * 3 // 4), 48 * 1024 * 1024)


def _round_up(x, m):
    return ((x + m - 1) // m) * m


def _padded_tile_bytes(shape, itemsize):
    """VMEM bytes of one buffer holding `shape`: last dim rounded up to 128
    lanes, second-to-last to the dtype sublane count (8 f32 / 16 bf16)."""
    shape = tuple(int(d) for d in shape)
    if len(shape) == 1:
        shape = (1,) + shape
    sublane = 8 * max(1, 4 // itemsize)
    lead = 1
    for d in shape[:-2]:
        lead *= d
    return lead * _round_up(shape[-2], sublane) * _round_up(shape[-1], 128) * itemsize


def _choose_batch_group(B, N, M, Dk, Dv, itemsize, attn_itemsize,
                        return_attn, lane_dense_out):
    """Largest batch group Bb (divisor of B) whose padded, double-buffered
    blocks plus in-kernel f32 temporaries fit the VMEM budget.  Prefer >= 2
    grid steps per v7x TensorCore (total grid >= 4, since the single grid
    axis is sharded across both cores), then >= 2, then 1."""
    budget = int(_vmem_limit_bytes() * 3 // 4)   # headroom for Mosaic scratch
    f32 = 4

    def footprint(Bb):
        b = 0
        # double-buffered input blocks
        b += 2 * _padded_tile_bytes((Bb, N, Dk), itemsize)   # q
        b += 2 * _padded_tile_bytes((Bb, M, Dk), itemsize)   # k
        b += 2 * _padded_tile_bytes((Bb, M, Dv), itemsize)   # v
        b += 2 * _padded_tile_bytes((N, 1), itemsize)        # alpha
        # double-buffered output blocks
        out_blk = (Bb, N * Dv) if lane_dense_out else (Bb, N, Dv)
        b += 2 * _padded_tile_bytes(out_blk, itemsize)
        if return_attn:
            attn_blk = (Bb, N * M) if lane_dense_out else (Bb, N, M)
            b += 2 * _padded_tile_bytes(attn_blk, attn_itemsize)
        # in-kernel temporaries at padded size: scores/exp/fixed, top-k
        # workspace + iota + masks, plus the output accumulator.
        b += 8 * _padded_tile_bytes((Bb, N, M), f32)
        b += 2 * _padded_tile_bytes((Bb, N, Dv), f32)
        b += 2 * _padded_tile_bytes((Bb, N, Dk), f32)
        return b

    divisors = sorted((d for d in range(1, B + 1) if B % d == 0), reverse=True)
    fits = [d for d in divisors if footprint(d) <= budget] or [1]
    for min_steps in (4, 2, 1):        # 4 => >= 2 steps per v7x TensorCore
        cands = [d for d in fits if B // d >= min_steps]
        if cands:
            return cands[0]
    return fits[0]


# ---------------------------------------------------------------------------
# k-th largest (torch.topk(x, k)[0][..., -1] semantics)
# ---------------------------------------------------------------------------

def _kth_largest(x, k, iota, exact_ties=True):
    """k-th largest value per row of x (..., M), counting multiplicity.

    exact_ties=True  : knock out exactly one occurrence of the current max per
                       iteration (bit-identical to torch.topk ties; 2 XLU
                       reductions / iteration).
    exact_ties=False : knock out all occurrences (1 XLU reduction / iteration;
                       identical unless exactly duplicated probabilities occur).
    # TODO(synk): for large M / topk switch to an O(log M) threshold binary
    # search to cut XLU pressure further.
    """
    M = x.shape[-1]
    w = x
    cur = jnp.max(w, axis=-1, keepdims=True)
    for _ in range(k - 1):
        is_max = w == cur
        if exact_ties:
            first = jnp.min(jnp.where(is_max, iota, M), axis=-1, keepdims=True)
            w = jnp.where(iota == first, -jnp.inf, w)
        else:
            w = jnp.where(is_max, -jnp.inf, w)
        cur = jnp.max(w, axis=-1, keepdims=True)
    return cur


# ---------------------------------------------------------------------------
# Kernel factory
# ---------------------------------------------------------------------------

def make_alpha_attention(B, N, M, Dk, Dv, temperature, topk, dtype=jnp.float32,
                         batch_group=None, return_attn=True, attn_dtype=None,
                         lane_dense_out=True, use_bf16_matmul=False,
                         exact_ties=True):
    """Build the pallas_call for AlphaAttention.forward (grad_sparse=False)."""
    eff_topk = topk + 1           # Sparse_attention.__init__ does top_k += 1
    eps = 10e-8                   # matches RIMs Sparse_attention
    apply_sparse = M > eff_topk   # if outs <= top_k, Sparse_attention is identity
    inv_temp = 1.0 / float(temperature)
    attn_dtype = dtype if attn_dtype is None else attn_dtype
    # TODO(synk): optional `mask` (masked_fill -inf before softmax) and the
    # grad_sparse=True (Sparse_grad_attention) path are not wired through.

    itemsize = jnp.dtype(dtype).itemsize
    attn_itemsize = jnp.dtype(attn_dtype).itemsize
    Bb = batch_group if batch_group is not None else _choose_batch_group(
        B, N, M, Dk, Dv, itemsize, attn_itemsize, return_attn, lane_dense_out)
    assert B % Bb == 0, "batch group must divide the batch"
    G = B // Bb
    grid = (G,)

    def kernel(alpha_ref, q_ref, k_ref, v_ref, out_ref, *attn_refs):
        q = q_ref[...]                              # (Bb, N, Dk)
        kk = k_ref[...]                             # (Bb, M, Dk)
        v = v_ref[...]                              # (Bb, M, Dv)
        a = alpha_ref[...].astype(jnp.float32)      # (N, 1) -> broadcasts over (Bb,N,M)

        if use_bf16_matmul and q.dtype == jnp.float32:
            q_mm, k_mm = q.astype(jnp.bfloat16), kk.astype(jnp.bfloat16)
        else:
            q_mm, k_mm = q, kk

        # scores = q @ k^T / temperature ; contraction stays on the feature
        # axis for both operands (no transposed copy of k / no relayout).
        s = jnp.einsum("bnd,bmd->bnm", q_mm, k_mm,
                       preferred_element_type=jnp.float32) * inv_temp
        s = s - jnp.max(s, axis=-1, keepdims=True)
        e = jnp.exp(s)
        # Exact reciprocal: the top-k boundary (and row sums) must match the
        # f32 reference; the approx EUP reciprocal caused 0.3%-level errors.
        inv = pl.reciprocal(jnp.sum(e, axis=-1, keepdims=True), approx=False)

        # Fused softmax-normalization + alpha fix-up:
        #   p = e*inv;  fixed[..., :-1] = p*a;  fixed[..., -1] = p*a + (1-a)
        col = jax.lax.broadcasted_iota(jnp.int32, e.shape, 2)
        fixed = e * (inv * a) + jnp.where(col == M - 1, 1.0 - a, 0.0)

        # Sparse_attention: keep top (topk+1) per row, shift by k-th value, renorm.
        if apply_sparse:
            delta = _kth_largest(fixed, eff_topk, col, exact_ties) + eps
            w = jnp.maximum(fixed - delta, 0.0)
            w = w * pl.reciprocal(jnp.sum(w, axis=-1, keepdims=True) + eps,
                                  approx=False)
        else:
            w = fixed

        # attn @ v on the MXU; probabilities in the value dtype so bf16 inputs
        # take the bf16 MXU path (f32 accumulation either way).
        o = jnp.einsum("bnm,bmd->bnd", w.astype(v.dtype), v,
                       preferred_element_type=jnp.float32)

        if lane_dense_out:
            # Lane-dense stores: last dim N*Dv / N*M instead of Dv / M wide
            # masked partial stores.
            out_ref[...] = o.reshape(Bb, N * Dv).astype(out_ref.dtype)
            if return_attn:
                attn_refs[0][...] = w.reshape(Bb, N * M).astype(attn_refs[0].dtype)
        else:
            out_ref[...] = o.astype(out_ref.dtype)
            if return_attn:
                attn_refs[0][...] = w.astype(attn_refs[0].dtype)

    # TODO(synk): after profiling for exposed DMA at large M, consider
    # pipeline_mode=pl.Buffered(3) on the k/v input specs (not on outputs).
    in_specs = [
        pl.BlockSpec((N, 1), lambda g: (0, 0)),          # alpha (shared across batch)
        pl.BlockSpec((Bb, N, Dk), lambda g: (g, 0, 0)),  # q
        pl.BlockSpec((Bb, M, Dk), lambda g: (g, 0, 0)),  # k
        pl.BlockSpec((Bb, M, Dv), lambda g: (g, 0, 0)),  # v
    ]

    if lane_dense_out:
        # Outputs laid out (grid, Bb, N*X): trailing block dims equal full
        # array dims (always legal) and the stored last dim is as lane-dense
        # as the problem allows; wrapper reshape back to (B, N, X) is free.
        out_specs = [pl.BlockSpec((None, Bb, N * Dv), lambda g: (g, 0, 0))]
        out_shape = [jax.ShapeDtypeStruct((G, Bb, N * Dv), dtype)]
        if return_attn:
            out_specs.append(pl.BlockSpec((None, Bb, N * M), lambda g: (g, 0, 0)))
            out_shape.append(jax.ShapeDtypeStruct((G, Bb, N * M), attn_dtype))
    else:
        out_specs = [pl.BlockSpec((Bb, N, Dv), lambda g: (g, 0, 0))]
        out_shape = [jax.ShapeDtypeStruct((B, N, Dv), dtype)]
        if return_attn:
            out_specs.append(pl.BlockSpec((Bb, N, M), lambda g: (g, 0, 0)))
            out_shape.append(jax.ShapeDtypeStruct((B, N, M), attn_dtype))

    grid_spec = pltpu.PrefetchScalarGridSpec(
        num_scalar_prefetch=0,
        grid=grid,
        in_specs=in_specs,
        out_specs=out_specs,
    )

    fn = pl.pallas_call(
        kernel,
        grid_spec=grid_spec,
        out_shape=tuple(out_shape),
        compiler_params=pltpu.CompilerParams(
            dimension_semantics=("parallel",),      # megacore-shardable on v7x
            vmem_limit_bytes=_vmem_limit_bytes(),   # lift 16/32 MiB default (clamped)
        ),
    )
    return fn, Bb, G


def alpha_attention(q, k, v, alpha, *, temperature, topk, batch_group=None,
                    return_attn=True, attn_dtype=None, lane_dense_out=True,
                    use_bf16_matmul=False, exact_ties=True):
    """Python wrapper matching AlphaAttention.forward (grad_sparse=False, mask=None)."""
    B, N, Dk = q.shape
    _, M, Dv = v.shape
    fn, Bb, G = make_alpha_attention(
        B, N, M, Dk, Dv, float(temperature), int(topk), dtype=q.dtype,
        batch_group=batch_group, return_attn=return_attn, attn_dtype=attn_dtype,
        lane_dense_out=lane_dense_out, use_bf16_matmul=use_bf16_matmul,
        exact_ties=exact_ties)

    alpha2d = alpha.reshape(N, 1).astype(q.dtype)
    results = fn(alpha2d, q, k, v)
    if not isinstance(results, (tuple, list)):
        results = (results,)

    out = results[0]
    if lane_dense_out:
        out = out.reshape(B, N, Dv)            # free: identical memory layout
    attn = None
    if return_attn:
        attn = results[1]
        if lane_dense_out:
            attn = attn.reshape(B, N, M)
    extra_loss = 0.0
    return out, attn, extra_loss


# ---------------------------------------------------------------------------
# Pure-JAX reference (mirrors the PyTorch forward)
# ---------------------------------------------------------------------------

def _reference(q, k, v, alpha, temperature, topk):
    attn = jnp.einsum("bnd,bmd->bnm", q, k, precision="highest") / temperature
    attn = jax.nn.softmax(attn, axis=2)
    a = alpha.reshape(1, -1, 1)
    fixed = jnp.concatenate(
        [attn[:, :, :-1] * a, 1.0 - (1.0 - attn[:, :, -1:]) * a], axis=2
    )
    eff = topk + 1
    M = attn.shape[2]
    eps = 10e-8
    if M > eff:
        flat = fixed.reshape(-1, M)
        delta = jax.lax.top_k(flat, eff)[0][:, -1:] + eps
        w = jnp.maximum(flat - delta, 0.0)
        w = w / (jnp.sum(w, axis=1, keepdims=True) + eps)
        fixed = w.reshape(attn.shape)
    out = jnp.einsum("bnm,bmd->bnd", fixed, v, precision="highest")
    return out, fixed


if __name__ == "__main__":
    # Small RIMs-like shapes; B=8 exercises the batch-grouped path
    # (Bb=2 -> grid=4 -> >=2 steps per v7x core) and the lane-dense stores.
    B, N, M, Dk, Dv = 8, 8, 8, 16, 16
    topk = 3
    temperature = math.sqrt(Dk)

    key = jax.random.PRNGKey(0)
    kq, kk_, kv, ka = jax.random.split(key, 4)
    q = jax.random.normal(kq, (B, N, Dk), dtype=jnp.float32)
    k = jax.random.normal(kk_, (B, M, Dk), dtype=jnp.float32)
    v = jax.random.normal(kv, (B, M, Dv), dtype=jnp.float32)
    alpha = jax.random.uniform(ka, (N,), dtype=jnp.float32)

    out, attn, extra_loss = alpha_attention(
        q, k, v, alpha, temperature=temperature, topk=topk
    )
    jax.block_until_ready((out, attn))

    ref_out, ref_attn = _reference(q, k, v, alpha, temperature, topk)
    np.testing.assert_allclose(np.asarray(attn), np.asarray(ref_attn),
                               rtol=2e-3, atol=2e-3)
    np.testing.assert_allclose(np.asarray(out), np.asarray(ref_out),
                               rtol=2e-3, atol=2e-3)
    print("KERNEL_OK")
</pallas_src>

<mosaic_0001>
module attributes {stable_mosaic.version = 11 : i64} {
  func.func @kernel(%arg0: i32, %arg1: memref<8x1xf32, #tpu.memory_space<vmem>>, %arg2: memref<2x8x16xf32, #tpu.memory_space<vmem>>, %arg3: memref<2x8x16xf32, #tpu.memory_space<vmem>>, %arg4: memref<2x8x16xf32, #tpu.memory_space<vmem>>, %arg5: memref<1x2x128xf32, #tpu.memory_space<vmem>>, %arg6: memref<1x2x64xf32, #tpu.memory_space<vmem>>) attributes {dimension_semantics = [#tpu.dimension_semantics<parallel>], iteration_bounds = array<i64: 4>, scalar_prefetch = 0 : i64, scratch_operands = 0 : i64, tpu.core_type = #tpu.core_type<tc>, window_params = [{pipeline_mode = #tpu.pipeline_mode<synchronous>, transform_indices = @transform_0, window_bounds = array<i64: 8, 1>}, {transform_indices = @transform_1, window_bounds = array<i64: 2, 8, 16>}, {transform_indices = @transform_2, window_bounds = array<i64: 2, 8, 16>}, {transform_indices = @transform_3, window_bounds = array<i64: 2, 8, 16>}, {transform_indices = @transform_4, window_bounds = array<i64: 1, 2, 128>}, {transform_indices = @transform_5, window_bounds = array<i64: 1, 2, 64>}]} {
    %c0 = arith.constant 0 : index
    %c0_0 = arith.constant 0 : index
    %c0_1 = arith.constant 0 : index
    %0 = vector.load %arg2[%c0, %c0_0, %c0_1] : memref<2x8x16xf32, #tpu.memory_space<vmem>>, vector<2x8x16xf32>
    %c0_2 = arith.constant 0 : index
    %c0_3 = arith.constant 0 : index
    %c0_4 = arith.constant 0 : index
    %1 = vector.load %arg3[%c0_2, %c0_3, %c0_4] : memref<2x8x16xf32, #tpu.memory_space<vmem>>, vector<2x8x16xf32>
    %c0_5 = arith.constant 0 : index
    %c0_6 = arith.constant 0 : index
    %c0_7 = arith.constant 0 : index
    %2 = vector.load %arg4[%c0_5, %c0_6, %c0_7] : memref<2x8x16xf32, #tpu.memory_space<vmem>>, vector<2x8x16xf32>
    %c0_8 = arith.constant 0 : index
    %c0_9 = arith.constant 0 : index
    %3 = vector.load %arg1[%c0_8, %c0_9] : memref<8x1xf32, #tpu.memory_space<vmem>>, vector<8x1xf32>
    "tpu.trace_start"() <{level = 10 : i32, message = "bnd,bmd->bnm"}> : () -> ()
    %cst = arith.constant dense<0.000000e+00> : vector<2x8x8xf32>
    %4 = tpu.matmul %0, %1, %cst {dimension_numbers = #tpu.dot_dimension_numbers<[2], [2], [1], [1], [0, 0, 0, 1, 1, 1], [0], [0]>} : vector<2x8x16xf32>, vector<2x8x16xf32>, vector<2x8x8xf32> -> vector<2x8x8xf32>
    "tpu.trace_stop"() : () -> ()
    %cst_10 = arith.constant 2.500000e-01 : f32
    %5 = vector.broadcast %cst_10 : f32 to vector<2x8x8xf32>
    %6 = arith.mulf %4, %5 : vector<2x8x8xf32>
    %cst_11 = arith.constant dense<0xFF800000> : vector<2x8xf32>
    %7 = vector.multi_reduction <maximumf>, %6, %cst_11 [2] : vector<2x8x8xf32> to vector<2x8xf32>
    %8 = vector.shape_cast %7 : vector<2x8xf32> to vector<2x8x1xf32>
    %9 = vector.broadcast %8 : vector<2x8x1xf32> to vector<2x8x8xf32>
    %10 = arith.subf %6, %9 : vector<2x8x8xf32>
    %11 = math.exp %10 : vector<2x8x8xf32>
    %cst_12 = arith.constant dense<0.000000e+00> : vector<2x8xf32>
    %12 = vector.multi_reduction <add>, %11, %cst_12 [2] : vector<2x8x8xf32> to vector<2x8xf32>
    %13 = vector.shape_cast %12 : vector<2x8xf32> to vector<2x8x1xf32>
    %14 = tpu.reciprocal %13 : vector<2x8x1xf32> -> vector<2x8x1xf32>
    %15 = tpu.iota {dimensions = array<i32: 2>} : vector<2x8x8xi32>
    %16 = vector.shape_cast %3 : vector<8x1xf32> to vector<1x8x1xf32>
    %17 = vector.broadcast %16 : vector<1x8x1xf32> to vector<2x8x1xf32>
    %18 = arith.mulf %14, %17 : vector<2x8x1xf32>
    %19 = vector.broadcast %18 : vector<2x8x1xf32> to vector<2x8x8xf32>
    %20 = arith.mulf %11, %19 : vector<2x8x8xf32>
    %c7_i32 = arith.constant 7 : i32
    %21 = vector.broadcast %c7_i32 : i32 to vector<2x8x8xi32>
    %22 = arith.cmpi eq, %15, %21 : vector<2x8x8xi32>
    %cst_13 = arith.constant 1.000000e+00 : f32
    %23 = vector.broadcast %cst_13 : f32 to vector<8x1xf32>
    %24 = arith.subf %23, %3 : vector<8x1xf32>
    %cst_14 = arith.constant 0.000000e+00 : f32
    %25 = vector.shape_cast %24 : vector<8x1xf32> to vector<1x8x1xf32>
    %26 = vector.broadcast %25 : vector<1x8x1xf32> to vector<2x8x8xf32>
    %27 = vector.broadcast %cst_14 : f32 to vector<2x8x8xf32>
    %28 = arith.select %22, %26, %27 : vector<2x8x8xi1>, vector<2x8x8xf32>
    %29 = arith.addf %20, %28 : vector<2x8x8xf32>
    %cst_15 = arith.constant dense<0xFF800000> : vector<2x8xf32>
    %30 = vector.multi_reduction <maximumf>, %29, %cst_15 [2] : vector<2x8x8xf32> to vector<2x8xf32>
    %31 = vector.shape_cast %30 : vector<2x8xf32> to vector<2x8x1xf32>
    %32 = vector.broadcast %31 : vector<2x8x1xf32> to vector<2x8x8xf32>
    %33 = arith.cmpf oeq, %29, %32 : vector<2x8x8xf32>
    %c8_i32 = arith.constant 8 : i32
    %34 = vector.broadcast %c8_i32 : i32 to vector<2x8x8xi32>
    %35 = arith.select %33, %15, %34 : vector<2x8x8xi1>, vector<2x8x8xi32>
    %cst_16 = arith.constant dense<2147483647> : vector<2x8xi32>
    %36 = vector.multi_reduction <minsi>, %35, %cst_16 [2] : vector<2x8x8xi32> to vector<2x8xi32>
    %37 = vector.shape_cast %36 : vector<2x8xi32> to vector<2x8x1xi32>
    %38 = vector.broadcast %37 : vector<2x8x1xi32> to vector<2x8x8xi32>
    %39 = arith.cmpi eq, %15, %38 : vector<2x8x8xi32>
    %cst_17 = arith.constant 0xFF800000 : f32
    %40 = vector.broadcast %cst_17 : f32 to vector<2x8x8xf32>
    %41 = arith.select %39, %40, %29 : vector<2x8x8xi1>, vector<2x8x8xf32>
    %cst_18 = arith.constant dense<0xFF800000> : vector<2x8xf32>
    %42 = vector.multi_reduction <maximumf>, %41, %cst_18 [2] : vector<2x8x8xf32> to vector<2x8xf32>
    %43 = vector.shape_cast %42 : vector<2x8xf32> to vector<2x8x1xf32>
    %44 = vector.broadcast %43 : vector<2x8x1xf32> to vector<2x8x8xf32>
    %45 = arith.cmpf oeq, %41, %44 : vector<2x8x8xf32>
    %c8_i32_19 = arith.constant 8 : i32
    %46 = vector.broadcast %c8_i32_19 : i32 to vector<2x8x8xi32>
    %47 = arith.select %45, %15, %46 : vector<2x8x8xi1>, vector<2x8x8xi32>
    %cst_20 = arith.constant dense<2147483647> : vector<2x8xi32>
    %48 = vector.multi_reduction <minsi>, %47, %cst_20 [2] : vector<2x8x8xi32> to vector<2x8xi32>
    %49 = vector.shape_cast %48 : vector<2x8xi32> to vector<2x8x1xi32>
    %50 = vector.broadcast %49 : vector<2x8x1xi32> to vector<2x8x8xi32>
    %51 = arith.cmpi eq, %15, %50 : vector<2x8x8xi32>
    %cst_21 = arith.constant 0xFF800000 : f32
    %52 = vector.broadcast %cst_21 : f32 to vector<2x8x8xf32>
    %53 = arith.select %51, %52, %41 : vector<2x8x8xi1>, vector<2x8x8xf32>
    %cst_22 = arith.constant dense<0xFF800000> : vector<2x8xf32>
    %54 = vector.multi_reduction <maximumf>, %53, %cst_22 [2] : vector<2x8x8xf32> to vector<2x8xf32>
    %55 = vector.shape_cast %54 : vector<2x8xf32> to vector<2x8x1xf32>
    %56 = vector.broadcast %55 : vector<2x8x1xf32> to vector<2x8x8xf32>
    %57 = arith.cmpf oeq, %53, %56 : vector<2x8x8xf32>
    %c8_i32_23 = arith.constant 8 : i32
    %58 = vector.broadcast %c8_i32_23 : i32 to vector<2x8x8xi32>
    %59 = arith.select %57, %15, %58 : vector<2x8x8xi1>, vector<2x8x8xi32>
    %cst_24 = arith.constant dense<2147483647> : vector<2x8xi32>
    %60 = vector.multi_reduction <minsi>, %59, %cst_24 [2] : vector<2x8x8xi32> to vector<2x8xi32>
    %61 = vector.shape_cast %60 : vector<2x8xi32> to vector<2x8x1xi32>
    %62 = vector.broadcast %61 : vector<2x8x1xi32> to vector<2x8x8xi32>
    %63 = arith.cmpi eq, %15, %62 : vector<2x8x8xi32>
    %cst_25 = arith.constant 0xFF800000 : f32
    %64 = vector.broadcast %cst_25 : f32 to vector<2x8x8xf32>
    %65 = arith.select %63, %64, %53 : vector<2x8x8xi1>, vector<2x8x8xf32>
    %cst_26 = arith.constant dense<0xFF800000> : vector<2x8xf32>
    %66 = vector.multi_reduction <maximumf>, %65, %cst_26 [2] : vector<2x8x8xf32> to vector<2x8xf32>
    %67 = vector.shape_cast %66 : vector<2x8xf32> to vector<2x8x1xf32>
    %cst_27 = arith.constant 1.000000e-07 : f32
    %68 = vector.broadcast %cst_27 : f32 to vector<2x8x1xf32>
    %69 = arith.addf %67, %68 : vector<2x8x1xf32>
    %70 = vector.broadcast %69 : vector<2x8x1xf32> to vector<2x8x8xf32>
    %71 = arith.subf %29, %70 : vector<2x8x8xf32>
    %cst_28 = arith.constant 0.000000e+00 : f32
    %72 = vector.broadcast %cst_28 : f32 to vector<2x8x8xf32>
    %73 = arith.maximumf %71, %72 : vector<2x8x8xf32>
    %cst_29 = arith.constant dense<0.000000e+00> : vector<2x8xf32>
    %74 = vector.multi_reduction <add>, %73, %cst_29 [2] : vector<2x8x8xf32> to vector<2x8xf32>
    %75 = vector.shape_cast %74 : vector<2x8xf32> to vector<2x8x1xf32>
    %cst_30 = arith.constant 1.000000e-07 : f32
    %76 = vector.broadcast %cst_30 : f32 to vector<2x8x1xf32>
    %77 = arith.addf %75, %76 : vector<2x8x1xf32>
    %78 = tpu.reciprocal %77 : vector<2x8x1xf32> -> vector<2x8x1xf32>
    %79 = vector.broadcast %78 : vector<2x8x1xf32> to vector<2x8x8xf32>
    %80 = arith.mulf %73, %79 : vector<2x8x8xf32>
    "tpu.trace_start"() <{level = 10 : i32, message = "bnm,bmd->bnd"}> : () -> ()
    %cst_31 = arith.constant dense<0.000000e+00> : vector<2x8x16xf32>
    %81 = tpu.matmul %80, %2, %cst_31 {dimension_numbers = #tpu.dot_dimension_numbers<[2], [1], [1], [2], [0, 0, 0, 1, 1, 2], [0], [0]>} : vector<2x8x8xf32>, vector<2x8x16xf32>, vector<2x8x16xf32> -> vector<2x8x16xf32>
    "tpu.trace_stop"() : () -> ()
    %82 = vector.shape_cast %81 : vector<2x8x16xf32> to vector<2x128xf32>
    %c0_32 = arith.constant 0 : index
    %c0_33 = arith.constant 0 : index
    %c0_34 = arith.constant 0 : index
    %83 = vector.load %arg5[%c0_32, %c0_33, %c0_34] : memref<1x2x128xf32, #tpu.memory_space<vmem>>, vector<1x2x128xf32>
    %84 = vector.shape_cast %83 : vector<1x2x128xf32> to vector<2x128xf32>
    %85 = vector.shape_cast %82 : vector<2x128xf32> to vector<1x2x128xf32>
    tpu.vector_store %arg5[%c0_32, %c0_33, %c0_34], %85 {strides = array<i32>} : memref<1x2x128xf32, #tpu.memory_space<vmem>>, vector<1x2x128xf32>,
    %86 = vector.shape_cast %80 : vector<2x8x8xf32> to vector<2x64xf32>
    %c0_35 = arith.constant 0 : index
    %c0_36 = arith.constant 0 : index
    %c0_37 = arith.constant 0 : index
    %87 = vector.load %arg6[%c0_35, %c0_36, %c0_37] : memref<1x2x64xf32, #tpu.memory_space<vmem>>, vector<1x2x64xf32>
    %88 = vector.shape_cast %87 : vector<1x2x64xf32> to vector<2x64xf32>
    %89 = vector.shape_cast %86 : vector<2x64xf32> to vector<1x2x64xf32>
    tpu.vector_store %arg6[%c0_35, %c0_36, %c0_37], %89 {strides = array<i32>} : memref<1x2x64xf32, #tpu.memory_space<vmem>>, vector<1x2x64xf32>,
    return
  }
  func.func @transform_0(%arg0: i32) -> (i32, i32) {
    %c0_i32 = arith.constant 0 : i32
    %c0_i32_0 = arith.constant 0 : i32
    %c0_i32_1 = arith.constant 0 : i32
    return %c0_i32, %c0_i32_0 : i32, i32
  }
  func.func @transform_1(%arg0: i32) -> (i32, i32, i32) {
    %c0_i32 = arith.constant 0 : i32
    %c0_i32_0 = arith.constant 0 : i32
    %c0_i32_1 = arith.constant 0 : i32
    return %arg0, %c0_i32, %c0_i32_0 : i32, i32, i32
  }
  func.func @transform_2(%arg0: i32) -> (i32, i32, i32) {
    %c0_i32 = arith.constant 0 : i32
    %c0_i32_0 = arith.constant 0 : i32
    %c0_i32_1 = arith.constant 0 : i32
    return %arg0, %c0_i32, %c0_i32_0 : i32, i32, i32
  }
  func.func @transform_3(%arg0: i32) -> (i32, i32, i32) {
    %c0_i32 = arith.constant 0 : i32
    %c0_i32_0 = arith.constant 0 : i32
    %c0_i32_1 = arith.constant 0 : i32
    return %arg0, %c0_i32, %c0_i32_0 : i32, i32, i32
  }
  func.func @transform_4(%arg0: i32) -> (i32, i32, i32) {
    %c0_i32 = arith.constant 0 : i32
    %c0_i32_0 = arith.constant 0 : i32
    %c0_i32_1 = arith.constant 0 : i32
    return %arg0, %c0_i32, %c0_i32_0 : i32, i32, i32
  }
  func.func @transform_5(%arg0: i32) -> (i32, i32, i32) {
    %c0_i32 = arith.constant 0 : i32
    %c0_i32_0 = arith.constant 0 : i32
    %c0_i32_1 = arith.constant 0 : i32
    return %arg0, %c0_i32, %c0_i32_0 : i32, i32, i32
  }
}

</mosaic_0001>

<llo_original>
// kernel: tpu_custom_call.1
$region0: #{tpu_custom_call.1}
  #allocation0 [shape = 'u32[]', space=smem, size = 0x4, offset = 0x4, fixed_abs, tag = 'smem constant byte address 0x4 - core index']
  #allocation1 [shape = 'u32[144,128]{1,0:T(1,128)}', space=vmem, size = 0x12000, scoped, tag = 'internal scratch']
  %s0 = inlined_call_operand.vmem [shape: f32[8,1], index: 0, kind: input, shape index: {}]
  %s1 = inlined_call_operand.hbm [shape: f32[8,8,16], index: 1, kind: input, shape index: {}]
  %s2 = inlined_call_operand.hbm [shape: f32[8,8,16], index: 2, kind: input, shape index: {}]
  %s3 = inlined_call_operand.hbm [shape: f32[8,8,16], index: 3, kind: input, shape index: {}]
  %s4 = inlined_call_operand.hbm [shape: f32[4,2,128], index: 4, kind: output, shape index: {0}]
  %s5 = inlined_call_operand.hbm [shape: f32[4,2,64], index: 5, kind: output, shape index: {1}]
  %6 = xla_tuple %s4, %s5
  %s7 = sld [smem:[#allocation0]]
  $region69: #{tpu_custom_call.1} parent=0
    _
  %s9 = ssub.s32 1, %s7
  %s10 = scalar_select 0, %s9, %s7
  $region1: #{tpu_custom_call.1} parent=0
    #allocation2 [shape = 'u8[16384]{0}', space=vmem, size = 0x4000, scoped, tag = 'input window, operand 1']
    #allocation3 [shape = 's32[2]{0}', space=sflag, size = 0x8, scoped, tag = 'scoped memory for tpu_custom_call.1']
    #allocation4 [shape = 's32[2]{0}', space=sflag, size = 0x8, scoped, tag = 'scoped memory for tpu_custom_call.1']
    #allocation5 [shape = 'u8[16384]{0}', space=vmem, size = 0x4000, scoped, tag = 'input window, operand 2']
    #allocation6 [shape = 's32[2]{0}', space=sflag, size = 0x8, scoped, tag = 'scoped memory for tpu_custom_call.1']
    #allocation7 [shape = 'u8[16384]{0}', space=vmem, size = 0x4000, scoped, tag = 'input window, operand 3']
    #allocation8 [shape = 'u8[2048]{0}', space=vmem, size = 0x800, scoped, tag = 'output window, operand 0']
    #allocation9 [shape = 'u8[2048]{0}', space=vmem, size = 0x800, scoped, tag = 'output window, operand 1']
    #allocation10 [shape = 's32[2]{0}', space=sflag, size = 0x8, scoped, tag = 'scoped memory for tpu_custom_call.1']
    %11 = vsyncpa [#allocation3], 0
    %s12 = scalar_lea.sflag [#allocation3], 1
    %13 = vsyncpa %s12, 0
    %14 = vsyncpa [#allocation6], 0
    %s15 = scalar_lea.sflag [#allocation6], 1
    %16 = vsyncpa %s15, 0
    %17 = vsyncpa [#allocation4], 0
    %s18 = scalar_lea.sflag [#allocation4], 1
    %19 = vsyncpa %s18, 0
    %20 = vsyncpa [#allocation10], 0
    %s21 = scalar_lea.sflag [#allocation10], 1
    %22 = vsyncpa %s21, 0
    loop: start=0, step=1, limit=6
    $region2: #{tpu_custom_call.1} parent=1 // loop_pre_header
      _
    $region3: #{tpu_custom_call.1} parent=1 // loop_header
      %s24 = sphi 0, %s28
      %p25 = scmp.ge.s32.totalorder %s24, 6
      %s32 = sphi 0, %s32
      %s34 = sphi 0, %s32
      %s35 = sphi 0, %s34
      %s49 = sphi 0, %s35
      %s55 = sphi 0, %s57
      %s58 = sphi 0, %s55
      %s59 = sphi 0, %s58
      %s75 = sphi 0, %s59
      %s81 = sphi 0, %s83
      %s84 = sphi 0, %s81
      %s85 = sphi 0, %s84
      %s101 = sphi 0, %s85
      %s107 = sphi 0, %s109
      %s110 = sphi 0, %s107
      %s111 = sphi 0, %s110
      %s127 = sphi 0, %s111
      %s133 = sphi 0, %s135
      %s136 = sphi 0, %s133
      %s137 = sphi 0, %s136
      %s153 = sphi 0, %s137
      %s159 = sphi 0, %s161
      %s162 = sphi 0, %s159
      %s163 = sphi 0, %s162
      %s179 = sphi 0, %s163
    $region4: #{tpu_custom_call.1} parent=1 // loop_header_branch
      %27 = sbr.rel (%p25) target = $region8
    $region5: #{tpu_custom_call.1} parent=1 // loop_body
      %s29 = ssub.s32 %s24, 1
      %s30 = ssub.s32 %s24, 2
      %s31 = sadd.s32 %s24, 1
      %s33 = sadd.s32 %s32, 1
      %p36 = scmp.eq.s32.totalorder %s24, 3
      %p37 = scmp.ne.s32.totalorder %s32, %s34
      %p38 = scmp.eq.s32.totalorder %s24, 0
      %p39 = por %p37, %p38
      %p40 = scmp.ne.s32.totalorder %s32, %s34
      %p41 = scmp.eq.s32.totalorder %s29, 3
      %p42 = por %p40, %p41
      %p43 = scmp.ne.s32.totalorder %s34, %s35
      %p44 = scmp.eq.s32.totalorder %s29, 0
      %p45 = por %p43, %p44
      %p46 = scmp.ne.s32.totalorder %s34, %s35
      %p47 = scmp.eq.s32.totalorder %s30, 3
      %p48 = por %p46, %p47
      %p50 = scmp.ne.s32.totalorder %s35, %s49
      %p51 = scmp.eq.s32.totalorder %s30, 0
      %p52 = por %p50, %p51
      %s53 = ssub.s32 %s24, %s31
      %p54 = scmp.eq.s32.totalorder %s53, 0
      %s56 = sadd.s32 %s55, 1
      %s57 = scalar_select %p54, %s55, %s56
      %p60 = pneg %p54
      %p61 = scmp.eq.s32.totalorder %s24, 3
      %p62 = por %p60, %p61
      %p63 = scmp.ne.s32.totalorder %s55, %s58
      %p64 = scmp.eq.s32.totalorder %s24, 0
      %p65 = por %p63, %p64
      %p66 = scmp.ne.s32.totalorder %s55, %s58
      %p67 = scmp.eq.s32.totalorder %s29, 3
      %p68 = por %p66, %p67
      %p69 = scmp.ne.s32.totalorder %s58, %s59
      %p70 = scmp.eq.s32.totalorder %s29, 0
      %p71 = por %p69, %p70
      %p72 = scmp.ne.s32.totalorder %s58, %s59
      %p73 = scmp.eq.s32.totalorder %s30, 3
      %p74 = por %p72, %p73
      %p76 = scmp.ne.s32.totalorder %s59, %s75
      %p77 = scmp.eq.s32.totalorder %s30, 0
      %p78 = por %p76, %p77
      %s79 = ssub.s32 %s24, %s31
      %p80 = scmp.eq.s32.totalorder %s79, 0
      %s82 = sadd.s32 %s81, 1
      %s83 = scalar_select %p80, %s81, %s82
      %p86 = pneg %p80
      %p87 = scmp.eq.s32.totalorder %s24, 3
      %p88 = por %p86, %p87
      %p89 = scmp.ne.s32.totalorder %s81, %s84
      %p90 = scmp.eq.s32.totalorder %s24, 0
      %p91 = por %p89, %p90
      %p92 = scmp.ne.s32.totalorder %s81, %s84
      %p93 = scmp.eq.s32.totalorder %s29, 3
      %p94 = por %p92, %p93
      %p95 = scmp.ne.s32.totalorder %s84, %s85
      %p96 = scmp.eq.s32.totalorder %s29, 0
      %p97 = por %p95, %p96
      %p98 = scmp.ne.s32.totalorder %s84, %s85
      %p99 = scmp.eq.s32.totalorder %s30, 3
      %p100 = por %p98, %p99
      %p102 = scmp.ne.s32.totalorder %s85, %s101
      %p103 = scmp.eq.s32.totalorder %s30, 0
      %p104 = por %p102, %p103
      %s105 = ssub.s32 %s24, %s31
      %p106 = scmp.eq.s32.totalorder %s105, 0
      %s108 = sadd.s32 %s107, 1
      %s109 = scalar_select %p106, %s107, %s108
      %p112 = pneg %p106
      %p113 = scmp.eq.s32.totalorder %s24, 3
      %p114 = por %p112, %p113
      %p115 = scmp.ne.s32.totalorder %s107, %s110
      %p116 = scmp.eq.s32.totalorder %s24, 0
      %p117 = por %p115, %p116
      %p118 = scmp.ne.s32.totalorder %s107, %s110
      %p119 = scmp.eq.s32.totalorder %s29, 3
      %p120 = por %p118, %p119
      %p121 = scmp.ne.s32.totalorder %s110, %s111
      %p122 = scmp.eq.s32.totalorder %s29, 0
      %p123 = por %p121, %p122
      %p124 = scmp.ne.s32.totalorder %s110, %s111
      %p125 = scmp.eq.s32.totalorder %s30, 3
      %p126 = por %p124, %p125
      %p128 = scmp.ne.s32.totalorder %s111, %s127
      %p129 = scmp.eq.s32.totalorder %s30, 0
      %p130 = por %p128, %p129
      %s131 = ssub.s32 %s24, %s31
      %p132 = scmp.eq.s32.totalorder %s131, 0
      %s134 = sadd.s32 %s133, 1
      %s135 = scalar_select %p132, %s133, %s134
      %p138 = pneg %p132
      %p139 = scmp.eq.s32.totalorder %s24, 3
      %p140 = por %p138, %p139
      %p141 = scmp.ne.s32.totalorder %s133, %s136
      %p142 = scmp.eq.s32.totalorder %s24, 0
      %p143 = por %p141, %p142
      %p144 = scmp.ne.s32.totalorder %s133, %s136
      %p145 = scmp.eq.s32.totalorder %s29, 3
      %p146 = por %p144, %p145
      %p147 = scmp.ne.s32.totalorder %s136, %s137
      %p148 = scmp.eq.s32.totalorder %s29, 0
      %p149 = por %p147, %p148
      %p150 = scmp.ne.s32.totalorder %s136, %s137
      %p151 = scmp.eq.s32.totalorder %s30, 3
      %p152 = por %p150, %p151
      %p154 = scmp.ne.s32.totalorder %s137, %s153
      %p155 = scmp.eq.s32.totalorder %s30, 0
      %p156 = por %p154, %p155
      %s157 = ssub.s32 %s24, %s31
      %p158 = scmp.eq.s32.totalorder %s157, 0
      %s160 = sadd.s32 %s159, 1
      %s161 = scalar_select %p158, %s159, %s160
      %p164 = pneg %p158
      %p165 = scmp.eq.s32.totalorder %s24, 3
      %p166 = por %p164, %p165
      %p167 = scmp.ne.s32.totalorder %s159, %s162
      %p168 = scmp.eq.s32.totalorder %s24, 0
      %p169 = por %p167, %p168
      %p170 = scmp.ne.s32.totalorder %s159, %s162
      %p171 = scmp.eq.s32.totalorder %s29, 3
      %p172 = por %p170, %p171
      %p173 = scmp.ne.s32.totalorder %s162, %s163
      %p174 = scmp.eq.s32.totalorder %s29, 0
      %p175 = por %p173, %p174
      %p176 = scmp.ne.s32.totalorder %s162, %s163
      %p177 = scmp.eq.s32.totalorder %s30, 3
      %p178 = por %p176, %p177
      %p180 = scmp.ne.s32.totalorder %s163, %s179
      %p181 = scmp.eq.s32.totalorder %s30, 0
      %p182 = por %p180, %p181
      %p183 = scmp.le.s32.totalorder 1, %s24
      %p184 = scmp.lt.s32.totalorder %s24, 5
      %p185 = pnand %p183, %p184
      %p186 = pneg %p185
      // Predicated region
      $region9: #{tpu_custom_call.1} parent=5 // pred_check
        _
      $region10: #{tpu_custom_call.1} parent=5 // pred_check_branch
        %188 = sbr.rel (%p185) target = $region12
      $region11: #{tpu_custom_call.1} parent=5 // pred_region
        %s189 = ssub.s32 %s24, 1
        // Predicated region
        $region13: #{tpu_custom_call.1} parent=11 // pred_check
          %p190 = pneg %p45
        $region14: #{tpu_custom_call.1} parent=11 // pred_check_branch
          %192 = sbr.rel (%p190) target = $region16
        $region15: #{tpu_custom_call.1} parent=11 // pred_region
          _
        $region16: #{tpu_custom_call.1} parent=11 // pred_fallthru
          _
      $region12: #{tpu_custom_call.1} parent=5 // pred_fallthru
        _
      %p193 = scmp.lt.s32.totalorder %s24, 4
      // Predicated region
      $region17: #{tpu_custom_call.1} parent=5 // pred_check
        %p194 = pneg %p193
      $region18: #{tpu_custom_call.1} parent=5 // pred_check_branch
        %196 = sbr.rel (%p194) target = $region20
      $region19: #{tpu_custom_call.1} parent=5 // pred_region
        // Predicated region
        $region21: #{tpu_custom_call.1} parent=19 // pred_check
          %p197 = pneg %p65
        $region22: #{tpu_custom_call.1} parent=19 // pred_check_branch
          %199 = sbr.rel (%p197) target = $region24
        $region23: #{tpu_custom_call.1} parent=19 // pred_region
          %s200 = sand.u32 %s55, 1
          %s201 = scalar_lea.sflag [#allocation3], %s200
          %s202 = sand.u32 %s55, 1
          %s203 = smul.addr %s202, 16
          %s204 = scalar_lea.vmem [#allocation2], %s203
          %s205 = smul.u32 2, %s24
          %s207 = ssub.s32 256, 256
          %208 = vsyncadd %s201, %s207
          %s209 = smul.addr %s205, 128
          %s210 = scalar_lea.hbm %s1, %s209
          %s211 = sshll.u32 %s204, 4
          %s212 = int_to_ptr.vmem [resolvable:$true] %s211
          %217 = dma.hbm_to_vmem [thread:$0]  %s210, 256, %s212, %s201, 128, 128, 8
        $region24: #{tpu_custom_call.1} parent=19 // pred_fallthru
          _
        // Predicated region
        $region25: #{tpu_custom_call.1} parent=19 // pred_check
          %p218 = pneg %p91
        $region26: #{tpu_custom_call.1} parent=19 // pred_check_branch
          %220 = sbr.rel (%p218) target = $region28
        $region27: #{tpu_custom_call.1} parent=19 // pred_region
          %s221 = sand.u32 %s24, 1
          %s222 = scalar_lea.sflag [#allocation6], %s221
          %s223 = sand.u32 %s81, 1
          %s224 = smul.addr %s223, 16
          %s225 = scalar_lea.vmem [#allocation5], %s224
          %s226 = smul.u32 2, %s24
          %s228 = ssub.s32 256, 256
          %229 = vsyncadd %s222, %s228
          %s230 = smul.addr %s226, 128
          %s231 = scalar_lea.hbm %s2, %s230
          %s232 = sshll.u32 %s225, 4
          %s233 = int_to_ptr.vmem [resolvable:$true] %s232
          %238 = dma.hbm_to_vmem [thread:$0]  %s231, 256, %s233, %s222, 128, 128, 8
        $region28: #{tpu_custom_call.1} parent=19 // pred_fallthru
          _
        // Predicated region
        $region29: #{tpu_custom_call.1} parent=19 // pred_check
          %p239 = pneg %p117
        $region30: #{tpu_custom_call.1} parent=19 // pred_check_branch
          %241 = sbr.rel (%p239) target = $region32
        $region31: #{tpu_custom_call.1} parent=19 // pred_region
          %s242 = sand.u32 %s24, 1
          %s243 = scalar_lea.sflag [#allocation6], %s242
          %s244 = sand.u32 %s107, 1
          %s245 = smul.addr %s244, 16
          %s246 = scalar_lea.vmem [#allocation7], %s245
          %s247 = smul.u32 2, %s24
          %s249 = ssub.s32 256, 256
          %250 = vsyncadd %s243, %s249
          %s251 = smul.addr %s247, 128
          %s252 = scalar_lea.hbm %s3, %s251
          %s253 = sshll.u32 %s246, 4
          %s254 = int_to_ptr.vmem [resolvable:$true] %s253
          %259 = dma.hbm_to_vmem [thread:$0]  %s252, 256, %s254, %s243, 128, 128, 8
        $region32: #{tpu_custom_call.1} parent=19 // pred_fallthru
          _
      $region20: #{tpu_custom_call.1} parent=5 // pred_fallthru
        _
      %p260 = scmp.le.s32.totalorder 1, %s24
      %p261 = scmp.lt.s32.totalorder %s24, 5
      %p262 = pnand %p260, %p261
      %p263 = pneg %p262
      // Predicated region
      $region33: #{tpu_custom_call.1} parent=5 // pred_check
        _
      $region34: #{tpu_custom_call.1} parent=5 // pred_check_branch
        %265 = sbr.rel (%p262) target = $region36
      $region35: #{tpu_custom_call.1} parent=5 // pred_region
        %s266 = ssub.s32 %s24, 1
        %s267 = sand.u32 %s58, 1
        %s268 = scalar_lea.sflag [#allocation3], %s267
        %s269 = sand.u32 %s58, 1
        %s270 = smul.addr %s269, 16
        %s271 = scalar_lea.vmem [#allocation2], %s270
        // Predicated region
        $region37: #{tpu_custom_call.1} parent=35 // pred_check
          %p272 = pneg %p71
        $region38: #{tpu_custom_call.1} parent=35 // pred_check_branch
          %274 = sbr.rel (%p272) target = $region40
        $region39: #{tpu_custom_call.1} parent=35 // pred_region
          %275 = dma.done %s268, 256
        $region40: #{tpu_custom_call.1} parent=35 // pred_fallthru
          _
        %s276 = sand.u32 %s29, 1
        %s277 = scalar_lea.sflag [#allocation6], %s276
        %s278 = sand.u32 %s84, 1
        %s279 = smul.addr %s278, 16
        %s280 = scalar_lea.vmem [#allocation5], %s279
        // Predicated region
        $region41: #{tpu_custom_call.1} parent=35 // pred_check
          %p281 = pneg %p97
        $region42: #{tpu_custom_call.1} parent=35 // pred_check_branch
          %283 = sbr.rel (%p281) target = $region44
        $region43: #{tpu_custom_call.1} parent=35 // pred_region
          %284 = dma.done %s277, 256
        $region44: #{tpu_custom_call.1} parent=35 // pred_fallthru
          _
        %s285 = sand.u32 %s29, 1
        %s286 = scalar_lea.sflag [#allocation6], %s285
        %s287 = sand.u32 %s110, 1
        %s288 = smul.addr %s287, 16
        %s289 = scalar_lea.vmem [#allocation7], %s288
        // Predicated region
        $region45: #{tpu_custom_call.1} parent=35 // pred_check
          %p290 = pneg %p123
        $region46: #{tpu_custom_call.1} parent=35 // pred_check_branch
          %292 = sbr.rel (%p290) target = $region48
        $region47: #{tpu_custom_call.1} parent=35 // pred_region
          %293 = dma.done %s286, 256
        $region48: #{tpu_custom_call.1} parent=35 // pred_fallthru
          _
        %p294 = pneg %p45
        %p295 = pneg %p42
        %s296 = sand.u32 %s58, 1
        %s297 = scalar_lea.sflag [#allocation3], %s296
        %s298 = sand.u32 %s58, 1
        %s299 = smul.addr %s298, 16
        %s300 = scalar_lea.vmem [#allocation2], %s299
        %p301 = pneg %p71
        %p302 = pneg %p68
        %s303 = sand.u32 %s29, 1
        %s304 = scalar_lea.sflag [#allocation6], %s303
        %s305 = sand.u32 %s84, 1
        %s306 = smul.addr %s305, 16
        %s307 = scalar_lea.vmem [#allocation5], %s306
        %p308 = pneg %p97
        %p309 = pneg %p94
        %s310 = sand.u32 %s29, 1
        %s311 = scalar_lea.sflag [#allocation6], %s310
        %s312 = sand.u32 %s110, 1
        %s313 = smul.addr %s312, 16
        %s314 = scalar_lea.vmem [#allocation7], %s313
        %p315 = pneg %p123
        %p316 = pneg %p120
        %p317 = pneg %p149
        %p318 = pneg %p146
        %s319 = sand.u32 %s136, 1
        %s320 = scalar_lea.sflag [#allocation4], %s319
        %s321 = sand.u32 %s136, 1
        %s322 = smul.addr %s321, 2
        %s323 = scalar_lea.vmem [#allocation8], %s322
        %p324 = pneg %p175
        %p325 = pneg %p172
        %s326 = sand.u32 %s162, 1
        %s327 = scalar_lea.sflag [#allocation10], %s326
        %s328 = sand.u32 %s162, 1
        %s329 = smul.addr %s328, 2
        %s330 = scalar_lea.vmem [#allocation9], %s329
        %s331 = smul.u32 2, %s29
        %s332 = smul.u32 2, %s29
        %s333 = smul.u32 2, %s29
        %v334 = vld [vmem:[%s271] sm:$0xff]
        %v335 = vld [vmem:[%s271 + $0x8] sm:$0xff]
        %v336 = vld [vmem:[%s280] sm:$0xff]
        %v337 = vld [vmem:[%s280 + $0x8] sm:$0xff]
        %v338 = vld [vmem:[%s289] sm:$0xff]
        %v339 = vld [vmem:[%s289 + $0x8] sm:$0xff]
        %v340 = vld [vmem:[%s0] sm:$0xff]
        %vm341 = vcmask 130048
        %v343 = vsel %vm341, %v334, 0
        %v346 = vsel %vm341, %v336, 0
        %348 = vmatprep.subr.mxu0 0.0
        %349 = vmatpush1.xpose.msra.mxu0 %v346
        %350 = vmatprep.subr.mxu0 0.0
        %351 = vmatpush1.xpose.msra.mxu0 0.0
        %352 = vmatprep.subr.mxu0 0.0
        %353 = vmatpush1.xpose.msra.mxu0 0.0
        %354 = vmatprep.subr.mxu0 0.0
        %355 = vmatpush1.xpose.msra.mxu0 0.0
        %356 = vmatprep.subr.mxu0 0.0
        %357 = vmatpush1.xpose.msra.mxu0 0.0
        %358 = vmatprep.subr.mxu0 0.0
        %359 = vmatpush1.xpose.msra.mxu0 0.0
        %360 = vmatprep.subr.mxu0 0.0
        %361 = vmatpush1.xpose.msra.mxu0 0.0
        %362 = vmatprep.subr.mxu0 0.0
        %363 = vmatpush1.xpose.msra.mxu0 0.0
        %364 = vmatprep.subr.mxu0 0.0
        %365 = vmatpush1.xpose.msra.mxu0 0.0
        %366 = vmatprep.subr.mxu0 0.0
        %367 = vmatpush1.xpose.msra.mxu0 0.0
        %368 = vmatprep.subr.mxu0 0.0
        %369 = vmatpush1.xpose.msra.mxu0 0.0
        %370 = vmatprep.subr.mxu0 0.0
        %371 = vmatpush1.xpose.msra.mxu0 0.0
        %372 = vmatprep.subr.mxu0 0.0
        %373 = vmatpush1.xpose.msra.mxu0 0.0
        %374 = vmatprep.subr.mxu0 0.0
        %375 = vmatpush1.xpose.msra.mxu0 0.0
        %376 = vmatprep.subr.mxu0 0.0
        %377 = vmatpush1.xpose.msra.mxu0 0.0
        %378 = vmatprep.subr.mxu0 0.0
        %379 = vmatpush1.xpose.msra.mxu0 0.0
        %380 = vmatprep.subr.mxu0 0.0
        %381 = vmatpush1.xpose.msra.mxu0 0.0
        %382 = vmatprep.subr.mxu0 0.0
        %383 = vmatpush1.xpose.msra.mxu0 0.0
        %384 = vmatprep.subr.mxu0 0.0
        %385 = vmatpush1.xpose.msra.mxu0 0.0
        %386 = vmatprep.subr.mxu0 0.0
        %387 = vmatpush1.xpose.msra.mxu0 0.0
        %388 = vmatprep.subr.mxu0 0.0
        %389 = vmatpush1.xpose.msra.mxu0 0.0
        %390 = vmatprep.subr.mxu0 0.0
        %391 = vmatpush1.xpose.msra.mxu0 0.0
        %392 = vmatprep.subr.mxu0 0.0
        %393 = vmatpush1.xpose.msra.mxu0 0.0
        %394 = vmatprep.subr.mxu0 0.0
        %395 = vmatpush1.xpose.msra.mxu0 0.0
        %396 = vmatprep.subr.mxu0 0.0
        %397 = vmatpush1.xpose.msra.mxu0 0.0
        %398 = vmatprep.subr.mxu0 0.0
        %399 = vmatpush1.xpose.msra.mxu0 0.0
        %400 = vmatprep.subr.mxu0 0.0
        %401 = vmatpush1.xpose.msra.mxu0 0.0
        %402 = vmatprep.subr.mxu0 0.0
        %403 = vmatpush1.xpose.msra.mxu0 0.0
        %404 = vmatprep.subr.mxu0 0.0
        %405 = vmatpush1.xpose.msra.mxu0 0.0
        %406 = vmatprep.subr.mxu0 0.0
        %407 = vmatpush1.xpose.msra.mxu0 0.0
        %408 = vmatprep.subr.mxu0 0.0
        %409 = vmatpush1.xpose.msra.mxu0 0.0
        %410 = vmatprep.subr.mxu0 0.0
        %411 = vmatpush1.xpose.msra.mxu0 0.0
        %412 = vmatprep.mubr.f32.mxu0 0.0
        %413 = vmatmul.mubr.f32.gmra.mrb[0].mxu0 %v343
        %v414 = vpop.f32.mrb[0].mxu0
        %v415 = vadd.f32 0.0, %v414
        %v416 = vpop.f32.mrb[0].mxu0
        %417 = vdwg.mxu0
        %v419 = vsel %vm341, %v335, 0
        %v422 = vsel %vm341, %v337, 0
        %424 = vmatprep.subr.mxu0 0.0
        %425 = vmatpush1.xpose.msra.mxu0 %v422
        %426 = vmatprep.subr.mxu0 0.0
        %427 = vmatpush1.xpose.msra.mxu0 0.0
        %428 = vmatprep.subr.mxu0 0.0
        %429 = vmatpush1.xpose.msra.mxu0 0.0
        %430 = vmatprep.subr.mxu0 0.0
        %431 = vmatpush1.xpose.msra.mxu0 0.0
        %432 = vmatprep.subr.mxu0 0.0
        %433 = vmatpush1.xpose.msra.mxu0 0.0
        %434 = vmatprep.subr.mxu0 0.0
        %435 = vmatpush1.xpose.msra.mxu0 0.0
        %436 = vmatprep.subr.mxu0 0.0
        %437 = vmatpush1.xpose.msra.mxu0 0.0
        %438 = vmatprep.subr.mxu0 0.0
        %439 = vmatpush1.xpose.msra.mxu0 0.0
        %440 = vmatprep.subr.mxu0 0.0
        %441 = vmatpush1.xpose.msra.mxu0 0.0
        %442 = vmatprep.subr.mxu0 0.0
        %443 = vmatpush1.xpose.msra.mxu0 0.0
        %444 = vmatprep.subr.mxu0 0.0
        %445 = vmatpush1.xpose.msra.mxu0 0.0
        %446 = vmatprep.subr.mxu0 0.0
        %447 = vmatpush1.xpose.msra.mxu0 0.0
        %448 = vmatprep.subr.mxu0 0.0
        %449 = vmatpush1.xpose.msra.mxu0 0.0
        %450 = vmatprep.subr.mxu0 0.0
        %451 = vmatpush1.xpose.msra.mxu0 0.0
        %452 = vmatprep.subr.mxu0 0.0
        %453 = vmatpush1.xpose.msra.mxu0 0.0
        %454 = vmatprep.subr.mxu0 0.0
        %455 = vmatpush1.xpose.msra.mxu0 0.0
        %456 = vmatprep.subr.mxu0 0.0
        %457 = vmatpush1.xpose.msra.mxu0 0.0
        %458 = vmatprep.subr.mxu0 0.0
        %459 = vmatpush1.xpose.msra.mxu0 0.0
        %460 = vmatprep.subr.mxu0 0.0
        %461 = vmatpush1.xpose.msra.mxu0 0.0
        %462 = vmatprep.subr.mxu0 0.0
        %463 = vmatpush1.xpose.msra.mxu0 0.0
        %464 = vmatprep.subr.mxu0 0.0
        %465 = vmatpush1.xpose.msra.mxu0 0.0
        %466 = vmatprep.subr.mxu0 0.0
        %467 = vmatpush1.xpose.msra.mxu0 0.0
        %468 = vmatprep.subr.mxu0 0.0
        %469 = vmatpush1.xpose.msra.mxu0 0.0
        %470 = vmatprep.subr.mxu0 0.0
        %471 = vmatpush1.xpose.msra.mxu0 0.0
        %472 = vmatprep.subr.mxu0 0.0
        %473 = vmatpush1.xpose.msra.mxu0 0.0
        %474 = vmatprep.subr.mxu0 0.0
        %475 = vmatpush1.xpose.msra.mxu0 0.0
        %476 = vmatprep.subr.mxu0 0.0
        %477 = vmatpush1.xpose.msra.mxu0 0.0
        %478 = vmatprep.subr.mxu0 0.0
        %479 = vmatpush1.xpose.msra.mxu0 0.0
        %480 = vmatprep.subr.mxu0 0.0
        %481 = vmatpush1.xpose.msra.mxu0 0.0
        %482 = vmatprep.subr.mxu0 0.0
        %483 = vmatpush1.xpose.msra.mxu0 0.0
        %484 = vmatprep.subr.mxu0 0.0
        %485 = vmatpush1.xpose.msra.mxu0 0.0
        %486 = vmatprep.subr.mxu0 0.0
        %487 = vmatpush1.xpose.msra.mxu0 0.0
        %488 = vmatprep.mubr.f32.mxu0 0.0
        %489 = vmatmul.mubr.f32.gmra.mrb[0].mxu0 %v419
        %v490 = vpop.f32.mrb[0].mxu0
        %v491 = vadd.f32 0.0, %v490
        %v492 = vpop.f32.mrb[0].mxu0
        %493 = vdwg.mxu0
        %v494 = vmul.f32 %v415, 0.25
        %v495 = vmul.f32 %v491, 0.25
        %vm496 = vcmask 64512
        %v497 = vsel %vm496, %v494, -inf
        %498 = vmax.xlane.f32.xlu0 %v497
        %v499 = vpop.xlane.xlu0 %498
        %v500 = vsel %vm496, %v495, -inf
        %501 = vmax.xlane.f32.xlu0 %v500
        %v502 = vpop.xlane.xlu0 %501
        %v503 = vsub.f32 %v494, %v499
        %v504 = vsub.f32 %v495, %v502
        %v505 = vmul.f32 %v503, 1.442695
        %v506 = vpow.pop %v505
        %v507 = vmul.f32 %v504, 1.442695
        %v508 = vpow.pop %v507
        %v509 = vsel %vm496, %v506, 0.0
        %510 = vadd.xlane.f32.xlu0 %v509
        %v511 = vpop.xlane.xlu0 %510
        %v512 = vsel %vm496, %v508, 0.0
        %513 = vadd.xlane.f32.xlu0 %v512
        %v514 = vpop.xlane.xlu0 %513
        %v515 = vrcp.pop %v511
        %v516 = vrcp.pop %v514
        %v517 = vlaneseq
        %v518 = vand.u32 %v517, 127
        %v519 = vmul.f32 %v515, %v340
        %v520 = vmul.f32 %v516, %v340
        %522 = vset.pattern.permute.xlu0 0
        %523 = vperm.xlu0 %522, %v519
        %v524 = vpop.permute.xlu0 %523
        %527 = vset.pattern.permute.xlu0 0
        %528 = vperm.xlu0 %527, %v520
        %v529 = vpop.permute.xlu0 %528
        %v531 = vmul.f32 %v506, %v524
        %v532 = vmul.f32 %v508, %v529
        %vm533 = vcmp.eq.s32.totalorder %v518, 7
        %v534 = vsub.f32 1.0, %v340
        %536 = vset.pattern.permute.xlu0 0
        %537 = vperm.xlu0 %536, %v534
        %v538 = vpop.permute.xlu0 %537
        %v540 = vsel %vm533, %v538, 0.0
        %v541 = vadd.f32 %v531, %v540
        %v542 = vadd.f32 %v532, %v540
        %v543 = vsel %vm496, %v541, -inf
        %544 = vmax.xlane.f32.xlu0 %v543
        %v545 = vpop.xlane.xlu0 %544
        %v546 = vsel %vm496, %v542, -inf
        %547 = vmax.xlane.f32.xlu0 %v546
        %v548 = vpop.xlane.xlu0 %547
        %vm549 = vcmp.eq.f32.partialorder %v541, %v545
        %vm550 = vcmp.eq.f32.partialorder %v542, %v548
        %v551 = vsel %vm549, %v518, 8
        %v552 = vsel %vm550, %v518, 8
        %v553 = vsel %vm496, %v551, 2147483647
        %v554 = vand.u32 %v553, 65535
        %v555 = vshra.s32 %v553, 16
        %v556 = vcvt.s32.f32 %v554
        %v557 = vcvt.s32.f32 %v555
        %558 = vmin.xlane.f32.xlu0 %v557
        %v559 = vpop.xlane.xlu0 %558
        %vm560 = vcmp.eq.f32.partialorder %v557, %v559
        %v561 = vsel %vm560, %v556, inf
        %562 = vmin.xlane.f32.xlu0 %v561
        %v563 = vpop.xlane.xlu0 %562
        %v564 = vcvt.f32.s32 %v563
        %v565 = vcvt.f32.s32 %v559
        %v566 = vshll.u32 %v565, 16
        %v567 = vadd.s32 %v566, %v564
        %v568 = vsel %vm496, %v552, 2147483647
        %v569 = vand.u32 %v568, 65535
        %v570 = vshra.s32 %v568, 16
        %v571 = vcvt.s32.f32 %v569
        %v572 = vcvt.s32.f32 %v570
        %573 = vmin.xlane.f32.xlu0 %v572
        %v574 = vpop.xlane.xlu0 %573
        %vm575 = vcmp.eq.f32.partialorder %v572, %v574
        %v576 = vsel %vm575, %v571, inf
        %577 = vmin.xlane.f32.xlu0 %v576
        %v578 = vpop.xlane.xlu0 %577
        %v579 = vcvt.f32.s32 %v578
        %v580 = vcvt.f32.s32 %v574
        %v581 = vshll.u32 %v580, 16
        %v582 = vadd.s32 %v581, %v579
        %vm583 = vcmp.eq.s32.totalorder %v518, %v567
        %vm584 = vcmp.eq.s32.totalorder %v518, %v582
        %v585 = vsel %vm583, -inf, %v541
        %v586 = vsel %vm584, -inf, %v542
        %v587 = vsel %vm496, %v585, -inf
        %588 = vmax.xlane.f32.xlu0 %v587
        %v589 = vpop.xlane.xlu0 %588
        %v590 = vsel %vm496, %v586, -inf
        %591 = vmax.xlane.f32.xlu0 %v590
        %v592 = vpop.xlane.xlu0 %591
        %vm593 = vcmp.eq.f32.partialorder %v585, %v589
        %vm594 = vcmp.eq.f32.partialorder %v586, %v592
        %v595 = vsel %vm593, %v518, 8
        %v596 = vsel %vm594, %v518, 8
        %v597 = vsel %vm496, %v595, 2147483647
        %v598 = vand.u32 %v597, 65535
        %v599 = vshra.s32 %v597, 16
        %v600 = vcvt.s32.f32 %v598
        %v601 = vcvt.s32.f32 %v599
        %602 = vmin.xlane.f32.xlu0 %v601
        %v603 = vpop.xlane.xlu0 %602
        %vm604 = vcmp.eq.f32.partialorder %v601, %v603
        %v605 = vsel %vm604, %v600, inf
        %606 = vmin.xlane.f32.xlu0 %v605
        %v607 = vpop.xlane.xlu0 %606
        %v608 = vcvt.f32.s32 %v607
        %v609 = vcvt.f32.s32 %v603
        %v610 = vshll.u32 %v609, 16
        %v611 = vadd.s32 %v610, %v608
        %v612 = vsel %vm496, %v596, 2147483647
        %v613 = vand.u32 %v612, 65535
        %v614 = vshra.s32 %v612, 16
        %v615 = vcvt.s32.f32 %v613
        %v616 = vcvt.s32.f32 %v614
        %617 = vmin.xlane.f32.xlu0 %v616
        %v618 = vpop.xlane.xlu0 %617
        %vm619 = vcmp.eq.f32.partialorder %v616, %v618
        %v620 = vsel %vm619, %v615, inf
        %621 = vmin.xlane.f32.xlu0 %v620
        %v622 = vpop.xlane.xlu0 %621
        %v623 = vcvt.f32.s32 %v622
        %v624 = vcvt.f32.s32 %v618
        %v625 = vshll.u32 %v624, 16
        %v626 = vadd.s32 %v625, %v623
        %vm627 = vcmp.eq.s32.totalorder %v518, %v611
        %vm628 = vcmp.eq.s32.totalorder %v518, %v626
        %v629 = vsel %vm627, -inf, %v585
        %v630 = vsel %vm628, -inf, %v586
        %v631 = vsel %vm496, %v629, -inf
        %632 = vmax.xlane.f32.xlu0 %v631
        %v633 = vpop.xlane.xlu0 %632
        %v634 = vsel %vm496, %v630, -inf
        %635 = vmax.xlane.f32.xlu0 %v634
        %v636 = vpop.xlane.xlu0 %635
        %vm637 = vcmp.eq.f32.partialorder %v629, %v633
        %vm638 = vcmp.eq.f32.partialorder %v630, %v636
        %v639 = vsel %vm637, %v518, 8
        %v640 = vsel %vm638, %v518, 8
        %v641 = vsel %vm496, %v639, 2147483647
        %v642 = vand.u32 %v641, 65535
        %v643 = vshra.s32 %v641, 16
        %v644 = vcvt.s32.f32 %v642
        %v645 = vcvt.s32.f32 %v643
        %646 = vmin.xlane.f32.xlu0 %v645
        %v647 = vpop.xlane.xlu0 %646
        %vm648 = vcmp.eq.f32.partialorder %v645, %v647
        %v649 = vsel %vm648, %v644, inf
        %650 = vmin.xlane.f32.xlu0 %v649
        %v651 = vpop.xlane.xlu0 %650
        %v652 = vcvt.f32.s32 %v651
        %v653 = vcvt.f32.s32 %v647
        %v654 = vshll.u32 %v653, 16
        %v655 = vadd.s32 %v654, %v652
        %v656 = vsel %vm496, %v640, 2147483647
        %v657 = vand.u32 %v656, 65535
        %v658 = vshra.s32 %v656, 16
        %v659 = vcvt.s32.f32 %v657
        %v660 = vcvt.s32.f32 %v658
        %661 = vmin.xlane.f32.xlu0 %v660
        %v662 = vpop.xlane.xlu0 %661
        %vm663 = vcmp.eq.f32.partialorder %v660, %v662
        %v664 = vsel %vm663, %v659, inf
        %665 = vmin.xlane.f32.xlu0 %v664
        %v666 = vpop.xlane.xlu0 %665
        %v667 = vcvt.f32.s32 %v666
        %v668 = vcvt.f32.s32 %v662
        %v669 = vshll.u32 %v668, 16
        %v670 = vadd.s32 %v669, %v667
        %vm671 = vcmp.eq.s32.totalorder %v518, %v655
        %vm672 = vcmp.eq.s32.totalorder %v518, %v670
        %v673 = vsel %vm671, -inf, %v629
        %v674 = vsel %vm672, -inf, %v630
        %v675 = vsel %vm496, %v673, -inf
        %676 = vmax.xlane.f32.xlu0 %v675
        %v677 = vpop.xlane.xlu0 %676
        %v678 = vsel %vm496, %v674, -inf
        %679 = vmax.xlane.f32.xlu0 %v678
        %v680 = vpop.xlane.xlu0 %679
        %v681 = vadd.f32 %v677, 1e-07
        %v682 = vadd.f32 %v680, 1e-07
        %v683 = vsub.f32 %v541, %v681
        %v684 = vsub.f32 %v542, %v682
        %v685 = vmax.f32 %v683, 0.0
        %v686 = vmax.f32 %v684, 0.0
        %v687 = vsel %vm496, %v685, 0.0
        %688 = vadd.xlane.f32.xlu0 %v687
        %v689 = vpop.xlane.xlu0 %688
        %v690 = vsel %vm496, %v686, 0.0
        %691 = vadd.xlane.f32.xlu0 %v690
        %v692 = vpop.xlane.xlu0 %691
        %v693 = vadd.f32 %v689, 1e-07
        %v694 = vadd.f32 %v692, 1e-07
        %v695 = vrcp.pop %v693
        %v696 = vrcp.pop %v694
        %v697 = vmul.f32 %v685, %v695
        %v698 = vmul.f32 %v686, %v696
        %v700 = vsel %vm496, %v697, 0
        %702 = vmatprep.subr.mxu0 0.0
        %703 = vmatpush1.msra.mxu0 %v338
        %704 = vmatprep.subr.mxu0 0.0
        %705 = vmatpush1.msra.mxu0 0.0
        %706 = vmatprep.subr.mxu0 0.0
        %707 = vmatpush1.msra.mxu0 0.0
        %708 = vmatprep.subr.mxu0 0.0
        %709 = vmatpush1.msra.mxu0 0.0
        %710 = vmatprep.subr.mxu0 0.0
        %711 = vmatpush1.msra.mxu0 0.0
        %712 = vmatprep.subr.mxu0 0.0
        %713 = vmatpush1.msra.mxu0 0.0
        %714 = vmatprep.subr.mxu0 0.0
        %715 = vmatpush1.msra.mxu0 0.0
        %716 = vmatprep.subr.mxu0 0.0
        %717 = vmatpush1.msra.mxu0 0.0
        %718 = vmatprep.subr.mxu0 0.0
        %719 = vmatpush1.msra.mxu0 0.0
        %720 = vmatprep.subr.mxu0 0.0
        %721 = vmatpush1.msra.mxu0 0.0
        %722 = vmatprep.subr.mxu0 0.0
        %723 = vmatpush1.msra.mxu0 0.0
        %724 = vmatprep.subr.mxu0 0.0
        %725 = vmatpush1.msra.mxu0 0.0
        %726 = vmatprep.subr.mxu0 0.0
        %727 = vmatpush1.msra.mxu0 0.0
        %728 = vmatprep.subr.mxu0 0.0
        %729 = vmatpush1.msra.mxu0 0.0
        %730 = vmatprep.subr.mxu0 0.0
        %731 = vmatpush1.msra.mxu0 0.0
        %732 = vmatprep.subr.mxu0 0.0
        %733 = vmatpush1.msra.mxu0 0.0
        %734 = vmatprep.subr.mxu0 0.0
        %735 = vmatpush1.msra.mxu0 0.0
        %736 = vmatprep.subr.mxu0 0.0
        %737 = vmatpush1.msra.mxu0 0.0
        %738 = vmatprep.subr.mxu0 0.0
        %739 = vmatpush1.msra.mxu0 0.0
        %740 = vmatprep.subr.mxu0 0.0
        %741 = vmatpush1.msra.mxu0 0.0
        %742 = vmatprep.subr.mxu0 0.0
        %743 = vmatpush1.msra.mxu0 0.0
        %744 = vmatprep.subr.mxu0 0.0
        %745 = vmatpush1.msra.mxu0 0.0
        %746 = vmatprep.subr.mxu0 0.0
        %747 = vmatpush1.msra.mxu0 0.0
        %748 = vmatprep.subr.mxu0 0.0
        %749 = vmatpush1.msra.mxu0 0.0
        %750 = vmatprep.subr.mxu0 0.0
        %751 = vmatpush1.msra.mxu0 0.0
        %752 = vmatprep.subr.mxu0 0.0
        %753 = vmatpush1.msra.mxu0 0.0
        %754 = vmatprep.subr.mxu0 0.0
        %755 = vmatpush1.msra.mxu0 0.0
        %756 = vmatprep.subr.mxu0 0.0
        %757 = vmatpush1.msra.mxu0 0.0
        %758 = vmatprep.subr.mxu0 0.0
        %759 = vmatpush1.msra.mxu0 0.0
        %760 = vmatprep.subr.mxu0 0.0
        %761 = vmatpush1.msra.mxu0 0.0
        %762 = vmatprep.subr.mxu0 0.0
        %763 = vmatpush1.msra.mxu0 0.0
        %764 = vmatprep.subr.mxu0 0.0
        %765 = vmatpush1.msra.mxu0 0.0
        %766 = vmatprep.mubr.f32.mxu0 0.0
        %767 = vmatmul.mubr.f32.gmra.mrb[0].mxu0 %v700
        %v768 = vpop.f32.mrb[0].mxu0
        %v769 = vadd.f32 0.0, %v768
        %v770 = vpop.f32.mrb[0].mxu0
        %771 = vdwg.mxu0
        %v773 = vsel %vm496, %v698, 0
        %775 = vmatprep.subr.mxu0 0.0
        %776 = vmatpush1.msra.mxu0 %v339
        %777 = vmatprep.subr.mxu0 0.0
        %778 = vmatpush1.msra.mxu0 0.0
        %779 = vmatprep.subr.mxu0 0.0
        %780 = vmatpush1.msra.mxu0 0.0
        %781 = vmatprep.subr.mxu0 0.0
        %782 = vmatpush1.msra.mxu0 0.0
        %783 = vmatprep.subr.mxu0 0.0
        %784 = vmatpush1.msra.mxu0 0.0
        %785 = vmatprep.subr.mxu0 0.0
        %786 = vmatpush1.msra.mxu0 0.0
        %787 = vmatprep.subr.mxu0 0.0
        %788 = vmatpush1.msra.mxu0 0.0
        %789 = vmatprep.subr.mxu0 0.0
        %790 = vmatpush1.msra.mxu0 0.0
        %791 = vmatprep.subr.mxu0 0.0
        %792 = vmatpush1.msra.mxu0 0.0
        %793 = vmatprep.subr.mxu0 0.0
        %794 = vmatpush1.msra.mxu0 0.0
        %795 = vmatprep.subr.mxu0 0.0
        %796 = vmatpush1.msra.mxu0 0.0
        %797 = vmatprep.subr.mxu0 0.0
        %798 = vmatpush1.msra.mxu0 0.0
        %799 = vmatprep.subr.mxu0 0.0
        %800 = vmatpush1.msra.mxu0 0.0
        %801 = vmatprep.subr.mxu0 0.0
        %802 = vmatpush1.msra.mxu0 0.0
        %803 = vmatprep.subr.mxu0 0.0
        %804 = vmatpush1.msra.mxu0 0.0
        %805 = vmatprep.subr.mxu0 0.0
        %806 = vmatpush1.msra.mxu0 0.0
        %807 = vmatprep.subr.mxu0 0.0
        %808 = vmatpush1.msra.mxu0 0.0
        %809 = vmatprep.subr.mxu0 0.0
        %810 = vmatpush1.msra.mxu0 0.0
        %811 = vmatprep.subr.mxu0 0.0
        %812 = vmatpush1.msra.mxu0 0.0
        %813 = vmatprep.subr.mxu0 0.0
        %814 = vmatpush1.msra.mxu0 0.0
        %815 = vmatprep.subr.mxu0 0.0
        %816 = vmatpush1.msra.mxu0 0.0
        %817 = vmatprep.subr.mxu0 0.0
        %818 = vmatpush1.msra.mxu0 0.0
        %819 = vmatprep.subr.mxu0 0.0
        %820 = vmatpush1.msra.mxu0 0.0
        %821 = vmatprep.subr.mxu0 0.0
        %822 = vmatpush1.msra.mxu0 0.0
        %823 = vmatprep.subr.mxu0 0.0
        %824 = vmatpush1.msra.mxu0 0.0
        %825 = vmatprep.subr.mxu0 0.0
        %826 = vmatpush1.msra.mxu0 0.0
        %827 = vmatprep.subr.mxu0 0.0
        %828 = vmatpush1.msra.mxu0 0.0
        %829 = vmatprep.subr.mxu0 0.0
        %830 = vmatpush1.msra.mxu0 0.0
        %831 = vmatprep.subr.mxu0 0.0
        %832 = vmatpush1.msra.mxu0 0.0
        %833 = vmatprep.subr.mxu0 0.0
        %834 = vmatpush1.msra.mxu0 0.0
        %835 = vmatprep.subr.mxu0 0.0
        %836 = vmatpush1.msra.mxu0 0.0
        %837 = vmatprep.subr.mxu0 0.0
        %838 = vmatpush1.msra.mxu0 0.0
        %839 = vmatprep.mubr.f32.mxu0 0.0
        %840 = vmatmul.mubr.f32.gmra.mrb[0].mxu0 %v773
        %v841 = vpop.f32.mrb[0].mxu0
        %v842 = vadd.f32 0.0, %v841
        %v843 = vpop.f32.mrb[0].mxu0
        %844 = vdwg.mxu0
        %v845 = vcombine.high %v769, 0.0
        %v847 = vunpack.c.l.s4 1983009808
        %v848 = vunpack.c.0.s8 %v847
        %v849 = vlaneseq
        %v850 = vshrl.u32 %v849, 7
        %v851 = vsub.s32 %v848, %v850
        %v852 = vrot.slane %v769, %v851
        %v854 = vunpack.c.l.s4 1983009808
        %v855 = vunpack.c.0.s8 %v854
        %v856 = vlaneseq
        %v857 = vshrl.u32 %v856, 7
        %v858 = vsub.s32 %v855, %v857
        %v859 = vrot.slane %v845, %v858
        %v860 = vcombine.high %v842, 0.0
        %v862 = vunpack.c.l.s4 1983009808
        %v863 = vunpack.c.0.s8 %v862
        %v864 = vlaneseq
        %v865 = vshrl.u32 %v864, 7
        %v866 = vsub.s32 %v863, %v865
        %v867 = vrot.slane %v842, %v866
        %v869 = vunpack.c.l.s4 1983009808
        %v870 = vunpack.c.0.s8 %v869
        %v871 = vlaneseq
        %v872 = vshrl.u32 %v871, 7
        %v873 = vsub.s32 %v870, %v872
        %v874 = vrot.slane %v860, %v873
        %v875 = vcombine.low %v852, %v867
        %v876 = vcombine.high %v852, %v867
        %v878 = vunpack.c.l.s4 1934713408
        %v879 = vunpack.c.0.s8 %v878
        %v880 = vlaneseq
        %v881 = vshrl.u32 %v880, 7
        %v882 = vsub.s32 %v879, %v881
        %v883 = vrot.slane %v875, %v882
        %v885 = vunpack.c.l.s4 1934713408
        %v886 = vunpack.c.0.s8 %v885
        %v887 = vlaneseq
        %v888 = vshrl.u32 %v887, 7
        %v889 = vsub.s32 %v886, %v888
        %v890 = vrot.slane %v876, %v889
        %v891 = vcombine.low %v859, %v874
        %v892 = vcombine.high %v859, %v874
        %v894 = vunpack.c.l.s4 1934713408
        %v895 = vunpack.c.0.s8 %v894
        %v896 = vlaneseq
        %v897 = vshrl.u32 %v896, 7
        %v898 = vsub.s32 %v895, %v897
        %v899 = vrot.slane %v891, %v898
        %v901 = vunpack.c.l.s4 1934713408
        %v902 = vunpack.c.0.s8 %v901
        %v903 = vlaneseq
        %v904 = vshrl.u32 %v903, 7
        %v905 = vsub.s32 %v902, %v904
        %v906 = vrot.slane %v892, %v905
        %v907 = vcombine.high %v883, 0.0
        %v908 = vcombine.high %v890, 0.0
        %v909 = vcombine.high %v899, 0.0
        %v910 = vcombine.high %v906, 0.0
        %912 = vrot.lane.b32.xlu0 %v907, 16
        %v913 = vpop.permute.xlu0 %912
        %916 = vrot.lane.b32.xlu0 %v890, 32
        %v917 = vpop.permute.xlu0 %916
        %920 = vrot.lane.b32.xlu0 %v908, 48
        %v921 = vpop.permute.xlu0 %920
        %924 = vrot.lane.b32.xlu0 %v899, 64
        %v925 = vpop.permute.xlu0 %924
        %928 = vrot.lane.b32.xlu0 %v909, 80
        %v929 = vpop.permute.xlu0 %928
        %932 = vrot.lane.b32.xlu0 %v906, 96
        %v933 = vpop.permute.xlu0 %932
        %936 = vrot.lane.b32.xlu0 %v910, 112
        %v937 = vpop.permute.xlu0 %936
        %v939 = vsel %vm341, %v883, %v913
        %vm940 = vcmask 261120
        %v941 = vsel %vm940, %v939, %v917
        %vm942 = vcmask 392192
        %v943 = vsel %vm942, %v941, %v921
        %vm944 = vcmask 523264
        %v945 = vsel %vm944, %v943, %v925
        %vm946 = vcmask 654336
        %v947 = vsel %vm946, %v945, %v929
        %vm948 = vcmask 785408
        %v949 = vsel %vm948, %v947, %v933
        %vm950 = vcmask 916480
        %v951 = vsel %vm950, %v949, %v937
        %952 = vst [vmem:[%s323] sm:$0x3] %v951
        %v953 = vcombine.high %v697, 0.0
        %v955 = vunpack.c.l.s4 1983009808
        %v956 = vunpack.c.0.s8 %v955
        %v957 = vlaneseq
        %v958 = vshrl.u32 %v957, 7
        %v959 = vsub.s32 %v956, %v958
        %v960 = vrot.slane %v697, %v959
        %v962 = vunpack.c.l.s4 1983009808
        %v963 = vunpack.c.0.s8 %v962
        %v964 = vlaneseq
        %v965 = vshrl.u32 %v964, 7
        %v966 = vsub.s32 %v963, %v965
        %v967 = vrot.slane %v953, %v966
        %v968 = vcombine.high %v698, 0.0
        %v970 = vunpack.c.l.s4 1983009808
        %v971 = vunpack.c.0.s8 %v970
        %v972 = vlaneseq
        %v973 = vshrl.u32 %v972, 7
        %v974 = vsub.s32 %v971, %v973
        %v975 = vrot.slane %v698, %v974
        %v977 = vunpack.c.l.s4 1983009808
        %v978 = vunpack.c.0.s8 %v977
        %v979 = vlaneseq
        %v980 = vshrl.u32 %v979, 7
        %v981 = vsub.s32 %v978, %v980
        %v982 = vrot.slane %v968, %v981
        %v983 = vcombine.low %v960, %v975
        %v984 = vcombine.high %v960, %v975
        %v986 = vunpack.c.l.s4 1934713408
        %v987 = vunpack.c.0.s8 %v986
        %v988 = vlaneseq
        %v989 = vshrl.u32 %v988, 7
        %v990 = vsub.s32 %v987, %v989
        %v991 = vrot.slane %v983, %v990
        %v993 = vunpack.c.l.s4 1934713408
        %v994 = vunpack.c.0.s8 %v993
        %v995 = vlaneseq
        %v996 = vshrl.u32 %v995, 7
        %v997 = vsub.s32 %v994, %v996
        %v998 = vrot.slane %v984, %v997
        %v999 = vcombine.low %v967, %v982
        %v1000 = vcombine.high %v967, %v982
        %v1002 = vunpack.c.l.s4 1934713408
        %v1003 = vunpack.c.0.s8 %v1002
        %v1004 = vlaneseq
        %v1005 = vshrl.u32 %v1004, 7
        %v1006 = vsub.s32 %v1003, %v1005
        %v1007 = vrot.slane %v999, %v1006
        %v1009 = vunpack.c.l.s4 1934713408
        %v1010 = vunpack.c.0.s8 %v1009
        %v1011 = vlaneseq
        %v1012 = vshrl.u32 %v1011, 7
        %v1013 = vsub.s32 %v1010, %v1012
        %v1014 = vrot.slane %v1000, %v1013
        %v1015 = vcombine.high %v991, 0.0
        %v1016 = vcombine.high %v998, 0.0
        %v1017 = vcombine.high %v1007, 0.0
        %v1018 = vcombine.high %v1014, 0.0
        %1020 = vrot.lane.b32.xlu0 %v1015, 8
        %v1021 = vpop.permute.xlu0 %1020
        %1024 = vrot.lane.b32.xlu0 %v998, 16
        %v1025 = vpop.permute.xlu0 %1024
        %1028 = vrot.lane.b32.xlu0 %v1016, 24
        %v1029 = vpop.permute.xlu0 %1028
        %1032 = vrot.lane.b32.xlu0 %v1007, 32
        %v1033 = vpop.permute.xlu0 %1032
        %1036 = vrot.lane.b32.xlu0 %v1017, 40
        %v1037 = vpop.permute.xlu0 %1036
        %1040 = vrot.lane.b32.xlu0 %v1014, 48
        %v1041 = vpop.permute.xlu0 %1040
        %1044 = vrot.lane.b32.xlu0 %v1018, 56
        %v1045 = vpop.permute.xlu0 %1044
        %v1047 = vsel %vm496, %v991, %v1021
        %v1048 = vsel %vm341, %v1047, %v1025
        %vm1049 = vcmask 195584
        %v1050 = vsel %vm1049, %v1048, %v1029
        %v1051 = vsel %vm940, %v1050, %v1033
        %vm1052 = vcmask 326656
        %v1053 = vsel %vm1052, %v1051, %v1037
        %v1054 = vsel %vm942, %v1053, %v1041
        %vm1055 = vcmask 457728
        %v1056 = vsel %vm1055, %v1054, %v1045
        %vm1057 = vcmask 517120
        %1058 = vst.msk [vmem:[%s330] sm:$0x3] %vm1057, %v1056
        %s1059 = sand.u32 %s136, 1
        %s1060 = scalar_lea.sflag [#allocation4], %s1059
        %s1061 = sand.u32 %s136, 1
        %s1062 = smul.addr %s1061, 2
        %s1063 = scalar_lea.vmem [#allocation8], %s1062
        %s1064 = sand.u32 %s162, 1
        %s1065 = scalar_lea.sflag [#allocation10], %s1064
        %s1066 = sand.u32 %s162, 1
        %s1067 = smul.addr %s1066, 2
        %s1068 = scalar_lea.vmem [#allocation9], %s1067
        // Predicated region
        $region49: #{tpu_custom_call.1} parent=35 // pred_check
          %p1069 = pneg %p146
        $region50: #{tpu_custom_call.1} parent=35 // pred_check_branch
          %1071 = sbr.rel (%p1069) target = $region52
        $region51: #{tpu_custom_call.1} parent=35 // pred_region
          %s1073 = ssub.s32 32, 32
          %1074 = vsyncadd %s1060, %s1073
          %s1075 = smul.addr %s29, 32
          %s1076 = scalar_lea.hbm %s4, %s1075
          %s1078 = sshll.u32 %s1063, 4
          %s1079 = int_to_ptr.vmem [resolvable:$true] %s1078
          %1081 = dma.vmem_to_hbm [thread:$0]  %s1079, 32, %s1076, %s1060
        $region52: #{tpu_custom_call.1} parent=35 // pred_fallthru
          _
        // Predicated region
        $region53: #{tpu_custom_call.1} parent=35 // pred_check
          %p1082 = pneg %p172
        $region54: #{tpu_custom_call.1} parent=35 // pred_check_branch
          %1084 = sbr.rel (%p1082) target = $region56
        $region55: #{tpu_custom_call.1} parent=35 // pred_region
          %s1086 = ssub.s32 32, 32
          %1087 = vsyncadd %s1065, %s1086
          %s1088 = smul.addr %s29, 32
          %s1089 = scalar_lea.hbm %s5, %s1088
          %s1091 = sshll.u32 %s1068, 4
          %s1092 = int_to_ptr.vmem [resolvable:$true] %s1091
          %1094 = dma.vmem_to_hbm [thread:$0]  %s1092, 32, %s1089, %s1065
        $region56: #{tpu_custom_call.1} parent=35 // pred_fallthru
          _
      $region36: #{tpu_custom_call.1} parent=5 // pred_fallthru
        _
      %p1095 = scmp.le.s32.totalorder 2, %s24
      // Predicated region
      $region57: #{tpu_custom_call.1} parent=5 // pred_check
        %p1096 = pneg %p1095
      $region58: #{tpu_custom_call.1} parent=5 // pred_check_branch
        %1098 = sbr.rel (%p1096) target = $region60
      $region59: #{tpu_custom_call.1} parent=5 // pred_region
        %s1099 = ssub.s32 %s24, 2
        // Predicated region
        $region61: #{tpu_custom_call.1} parent=59 // pred_check
          %p1100 = pneg %p152
        $region62: #{tpu_custom_call.1} parent=59 // pred_check_branch
          %1102 = sbr.rel (%p1100) target = $region64
        $region63: #{tpu_custom_call.1} parent=59 // pred_region
          %s1103 = sand.u32 %s137, 1
          %s1104 = scalar_lea.sflag [#allocation4], %s1103
          %s1105 = sand.u32 %s137, 1
          %s1106 = smul.addr %s1105, 2
          %s1107 = scalar_lea.vmem [#allocation8], %s1106
          %1108 = dma.done %s1104, 32
        $region64: #{tpu_custom_call.1} parent=59 // pred_fallthru
          _
        // Predicated region
        $region65: #{tpu_custom_call.1} parent=59 // pred_check
          %p1109 = pneg %p178
        $region66: #{tpu_custom_call.1} parent=59 // pred_check_branch
          %1111 = sbr.rel (%p1109) target = $region68
        $region67: #{tpu_custom_call.1} parent=59 // pred_region
          %s1112 = sand.u32 %s163, 1
          %s1113 = scalar_lea.sflag [#allocation10], %s1112
          %s1114 = sand.u32 %s163, 1
          %s1115 = smul.addr %s1114, 2
          %s1116 = scalar_lea.vmem [#allocation9], %s1115
          %1117 = dma.done %s1113, 32
        $region68: #{tpu_custom_call.1} parent=59 // pred_fallthru
          _
      $region60: #{tpu_custom_call.1} parent=5 // pred_fallthru
        _
    $region6: #{tpu_custom_call.1} parent=1 // loop_footer
      %s28 = sadd.s32 1, %s24
    $region7: #{tpu_custom_call.1} parent=1 // loop_footer_branch
      %23 = sbr.rel target = $region3
    $region8: #{tpu_custom_call.1} parent=1 // loop_exit
      _
    %1118 = vsyncpa [#allocation3], 1
    %s1119 = scalar_lea.sflag [#allocation3], 1
    %1120 = vsyncpa %s1119, 1
    %1121 = vsyncpa [#allocation6], 1
    %s1122 = scalar_lea.sflag [#allocation6], 1
    %1123 = vsyncpa %s1122, 1
    %1124 = vsyncpa [#allocation4], 1
    %s1125 = scalar_lea.sflag [#allocation4], 1
    %1126 = vsyncpa %s1125, 1
    %1127 = vsyncpa [#allocation10], 1
    %s1128 = scalar_lea.sflag [#allocation10], 1
    %1129 = vsyncpa %s1128, 1

</llo_original>
